<compile_context>
chip_gen: v7x
topology: tpu7x:2x2x1
jax: 0.10.0
libtpu: 0.0.40
codegen_flags: <defaults>
</compile_context>

<pallas_src>
import functools
import math

import jax
import jax.numpy as jnp
from jax import lax
from jax.experimental import pallas as pl
from jax.experimental.pallas import tpu as pltpu


# ----------------------------------------------------------------------------
# Kernel: fused  (x @ W1^T) -> activation -> (h @ W2^T) [+ x]
# Grid axis 0: row tiles ("parallel"), axis 1: hidden tiles ("arbitrary").
# Weights are consumed in their PyTorch (out_features, in_features) layout via
# dot_general contractions on dim 1 -- no in-kernel transpose.
# ----------------------------------------------------------------------------
def _mlp_kernel(x_ref, w1_ref, w2_ref, o_ref, *scratch,
                activation, add_input, gelu_approximate):
    # f32 outputs accumulate directly in the resident output block; narrower
    # output dtypes use the f32 scratch accumulator.
    acc_ref = scratch[0] if scratch else o_ref
    k = pl.program_id(1)

    x = x_ref[...]                                        # (bm, size)

    @pl.when(k == 0)
    def _init():
        if add_input:
            acc_ref[...] = x.astype(acc_ref.dtype)        # fold residual into init
        else:
            acc_ref[...] = jnp.zeros_like(acc_ref)

    # linear1 slice: x (bm, size) . W1_slice (tile_h, size) -> (bm, tile_h)
    h = lax.dot_general(
        x, w1_ref[...],
        dimension_numbers=(((1,), (1,)), ((), ())),
        preferred_element_type=jnp.float32,
    )

    if activation == "gelu":
        if gelu_approximate:
            # tanh approximation: transcendental goes to the EUP slot
            # (essentially free under MXU); slight numeric deviation from
            # torch's exact-erf default.
            h = jax.nn.gelu(h, approximate=True)
        else:
            # exact GELU (erf), matching torch.nn.functional.gelu default.
            h = 0.5 * h * (1.0 + lax.erf(h * (1.0 / math.sqrt(2.0))))
    elif activation == "relu":
        h = jnp.maximum(h, 0.0)
    else:
        raise NotImplementedError(f"Activation {activation} not implemented.")

    # linear2 partial: h (bm, tile_h) . W2_slice (size, tile_h) -> (bm, size)
    acc_ref[...] += lax.dot_general(
        h.astype(w2_ref.dtype), w2_ref[...],
        dimension_numbers=(((1,), (1,)), ((), ())),
        preferred_element_type=jnp.float32,
    ).astype(acc_ref.dtype)

    if scratch:  # narrow output dtype: cast out of the f32 scratch once
        @pl.when(k == pl.num_programs(1) - 1)
        def _finalize():
            o_ref[...] = acc_ref[...].astype(o_ref.dtype)


# ----------------------------------------------------------------------------
# Chip-aware tile selection.
# ----------------------------------------------------------------------------
def _round_up(n, m):
    return ((n + m - 1) // m) * m


def _hidden_tile_candidates(hidden):
    """Descending hidden-tile candidates: the full dim, then 256-multiple and
    128-multiple divisors (v6e/v7x MXU is 2x256x256, v5e 4x128x128)."""
    cands = {hidden}
    for align in (256, 128):
        c = (hidden // align) * align
        while c >= align:
            if hidden % c == 0:
                cands.add(c)
            c -= align
    return sorted(cands, reverse=True)


def _select_tiles(M, size, hidden, x_bytes, w_bytes, out_bytes, needs_acc, budget):
    """Back-solve (bm, tile_h) from the chip VMEM budget.

    Priority: (1) keep the full weight pair resident (fetched once, reused by
    every row tile); (2) maximize bm (fewer weight re-streams when they are
    not resident, better MXU utilization); (3) largest dividing hidden tile.
    """
    row_align = 8 if x_bytes >= 4 else 16
    acc_row = size * 4 if needs_acc else 0

    def vmem_use(bm, th):
        return (2 * bm * size * (x_bytes + out_bytes)   # x + out tiles (double buffered)
                + 4 * th * size * w_bytes               # W1 + W2 slices (double buffered)
                + bm * acc_row)                         # f32 accumulator scratch

    m_aligned = _round_up(M, row_align)
    bm_cands = sorted({min(m_aligned, _round_up(c, row_align))
                       for c in (1024, 512, 384, 256, 128, 64, 32, 16, 8)},
                      reverse=True)
    h_cands = _hidden_tile_candidates(hidden)

    sel = None
    # Pass 1: weights fully resident in VMEM.
    for bm in bm_cands:
        if vmem_use(bm, hidden) <= budget:
            sel = (bm, hidden)
            break
    # Pass 2: weights streamed; maximize bm first, then the hidden tile.
    if sel is None:
        for bm in bm_cands:
            for th in h_cands:
                if vmem_use(bm, th) <= budget:
                    sel = (bm, th)
                    break
            if sel is not None:
                break
    if sel is None:
        sel = (bm_cands[-1], h_cands[-1])   # smallest tiles; let the compiler cope

    bm, th = sel
    # Megacore: with resident weights there is no HBM cost to splitting, so
    # make sure the "parallel" row axis has >= 2 tiles for v7x's two TCs.
    if th == hidden and M >= 512 and (M + bm - 1) // bm < 2:
        bm = _round_up((M + 1) // 2, row_align)
    return bm, th


# ----------------------------------------------------------------------------
# Wrapper.
# ----------------------------------------------------------------------------
def mlp_pallas(x, w1, w2, *, activation="gelu", add_input=False,
               gelu_approximate=False, block_m=None, block_h=None,
               vmem_fraction=0.70):
    """Fused MLP forward.

    x  : (..., size)
    w1 : (hidden, size)   -- PyTorch nn.Linear weight layout (out, in)
    w2 : (size, hidden)
    """
    input_shape = x.shape
    size = x.shape[-1]
    hidden, size_in = w1.shape
    assert size_in == size and w2.shape == (size, hidden)

    x2d = x.reshape(-1, size)
    M = x2d.shape[0]

    x_bytes = jnp.dtype(x.dtype).itemsize
    w_bytes = jnp.dtype(w1.dtype).itemsize
    out_dtype = x.dtype
    out_bytes = jnp.dtype(out_dtype).itemsize
    needs_acc = jnp.dtype(out_dtype) != jnp.dtype(jnp.float32)

    # --- chip-aware VMEM budget (v5e/v6e: 128 MiB, v7x: 64 MiB per TC) ------
    try:
        vmem_cap = int(pltpu.get_tpu_info().vmem_capacity_bytes)
    except Exception:
        vmem_cap = 64 * 1024 * 1024          # conservative: v7x per-TC VMEM
    budget = max(int(vmem_fraction * vmem_cap), 16 * 1024 * 1024)

    bm, tile_h = _select_tiles(M, size, hidden, x_bytes, w_bytes, out_bytes,
                               needs_acc, budget)
    # Optional manual overrides (mainly for tests / tuning sweeps).
    row_align = 8 if x_bytes >= 4 else 16
    if block_m is not None:
        bm = max(row_align,
                 _round_up(min(block_m, _round_up(M, row_align)), row_align))
    if block_h is not None and hidden % block_h == 0:
        tile_h = block_h

    grid = (pl.cdiv(M, bm), hidden // tile_h)   # ragged last row tile handled by Pallas

    kernel = functools.partial(
        _mlp_kernel, activation=activation, add_input=add_input,
        gelu_approximate=gelu_approximate)

    scratch = (pltpu.VMEM((bm, size), jnp.float32),) if needs_acc else ()

    cost = pl.CostEstimate(
        flops=int(4 * M * size * hidden),       # two matmuls, 2*M*size*hidden each
        transcendentals=int(M * hidden) if activation == "gelu" else 0,
        bytes_accessed=int(x2d.size * x_bytes + w1.size * w_bytes
                           + w2.size * w_bytes + M * size * out_bytes),
    )

    out2d = pl.pallas_call(
        kernel,
        out_shape=jax.ShapeDtypeStruct((M, size), out_dtype),
        grid_spec=pltpu.PrefetchScalarGridSpec(
            num_scalar_prefetch=0,
            grid=grid,
            in_specs=[
                pl.BlockSpec((bm, size), lambda i, k: (i, 0)),      # x row tile
                pl.BlockSpec((tile_h, size), lambda i, k: (k, 0)),  # W1 hidden-slice
                pl.BlockSpec((size, tile_h), lambda i, k: (0, k)),  # W2 hidden-slice
            ],
            out_specs=pl.BlockSpec((bm, size), lambda i, k: (i, 0)),
            scratch_shapes=scratch,
        ),
        compiler_params=pltpu.CompilerParams(
            dimension_semantics=("parallel", "arbitrary"),
            vmem_limit_bytes=int(budget),
        ),
        cost_estimate=cost,
    )(x2d, w1, w2)

    return out2d.reshape(input_shape)


# ----------------------------------------------------------------------------
# Deterministic parameter construction (matches torch.nn.Linear default init:
# uniform(-1/sqrt(in_features), 1/sqrt(in_features)); no bias).
# ----------------------------------------------------------------------------
def make_mlp_params(key, size, hidden_size, *, dtype=jnp.float32,
                    initialize_output_to_zero=True):
    k1, k2 = jax.random.split(key)
    bound1 = 1.0 / math.sqrt(size)
    w1 = jax.random.uniform(k1, (hidden_size, size), dtype=dtype,
                            minval=-bound1, maxval=bound1)
    if initialize_output_to_zero:
        w2 = jnp.zeros((size, hidden_size), dtype=dtype)
    else:
        bound2 = 1.0 / math.sqrt(hidden_size)
        w2 = jax.random.uniform(k2, (size, hidden_size), dtype=dtype,
                                minval=-bound2, maxval=bound2)
    return w1, w2


# pure-JAX reference for verification
def mlp_reference(x, w1, w2, *, activation="gelu", add_input=False):
    shape = x.shape
    x2d = x.reshape(-1, x.shape[-1])
    h = x2d @ w1.T
    if activation == "gelu":
        h = jax.nn.gelu(h, approximate=False)
    else:
        h = jnp.maximum(h, 0.0)
    out = h @ w2.T
    if add_input:
        out = out + x2d
    return out.reshape(shape)


if __name__ == "__main__":
    key = jax.random.PRNGKey(0)
    kx, kp, kx2, kp2, kx3 = jax.random.split(key, 5)

    # 1) default module config: initialize_output_to_zero=True, bias=False, GELU
    batch, seq, size, hidden = 2, 8, 32, 64
    x = jax.random.normal(kx, (batch, seq, size), dtype=jnp.float32)
    w1_z, w2_z = make_mlp_params(kp, size, hidden, initialize_output_to_zero=True)
    out_default = jax.block_until_ready(mlp_pallas(x, w1_z, w2_z, activation="gelu"))
    ref_default = mlp_reference(x, w1_z, w2_z, activation="gelu")
    assert out_default.shape == x.shape
    assert jnp.allclose(out_default, ref_default, atol=1e-5)

    # 2) non-zero output layer + add_input residual; M=15 exercises the ragged
    #    last row tile (no host-side padding copy).  ReLU also checked.
    x_odd = jax.random.normal(kx2, (3, 5, size), dtype=jnp.float32)
    w1, w2 = make_mlp_params(kp, size, hidden, initialize_output_to_zero=False)
    out = jax.block_until_ready(
        mlp_pallas(x_odd, w1, w2, activation="gelu", add_input=True))
    ref = mlp_reference(x_odd, w1, w2, activation="gelu", add_input=True)
    assert jnp.allclose(out, ref, atol=1e-5), float(jnp.abs(out - ref).max())
    out_r = jax.block_until_ready(mlp_pallas(x_odd, w1, w2, activation="relu"))
    ref_r = mlp_reference(x_odd, w1, w2, activation="relu")
    assert jnp.allclose(out_r, ref_r, atol=1e-5)

    # 3) forced hidden tiling (grid axis 1 > 1): f32 path accumulates directly
    #    into the resident output block (no scratch).
    size3, hidden3 = 128, 256
    x3 = jax.random.normal(kx3, (2, 8, size3), dtype=jnp.float32)
    w1_3, w2_3 = make_mlp_params(kp2, size3, hidden3, initialize_output_to_zero=False)
    out3 = jax.block_until_ready(
        mlp_pallas(x3, w1_3, w2_3, activation="gelu", add_input=True, block_h=128))
    ref3 = mlp_reference(x3, w1_3, w2_3, activation="gelu", add_input=True)
    assert jnp.allclose(out3, ref3, atol=1e-4), float(jnp.abs(out3 - ref3).max())

    # 4) bf16 path: narrow output dtype -> f32 scratch accumulator; still with
    #    forced hidden tiling.
    xb = x3.astype(jnp.bfloat16)
    w1_b, w2_b = w1_3.astype(jnp.bfloat16), w2_3.astype(jnp.bfloat16)
    outb = jax.block_until_ready(
        mlp_pallas(xb, w1_b, w2_b, activation="gelu", add_input=True, block_h=128))
    refb = mlp_reference(xb.astype(jnp.float32), w1_b.astype(jnp.float32),
                         w2_b.astype(jnp.float32), activation="gelu", add_input=True)
    assert outb.dtype == jnp.bfloat16
    err = float(jnp.abs(outb.astype(jnp.float32) - refb).max())
    assert jnp.allclose(outb.astype(jnp.float32), refb, atol=3e-2), err

    # TODO(synk): `recompute` (activation checkpointing) and
    # `save_peak_mem_factor` / `allow_inplace` are training / peak-memory
    # features, not forward math; intentionally not reproduced here.

    print("KERNEL_OK")
</pallas_src>

<mosaic_0001>
module attributes {stable_mosaic.version = 11 : i64} {
  func.func @_mlp_kernel(%arg0: i32, %arg1: i32, %arg2: memref<16x32xf32, #tpu.memory_space<vmem>>, %arg3: memref<64x32xf32, #tpu.memory_space<vmem>>, %arg4: memref<32x64xf32, #tpu.memory_space<vmem>>, %arg5: memref<16x32xf32, #tpu.memory_space<vmem>>) attributes {dimension_semantics = [#tpu.dimension_semantics<parallel>, #tpu.dimension_semantics<arbitrary>], iteration_bounds = array<i64: 1, 1>, scalar_prefetch = 0 : i64, scratch_operands = 0 : i64, tpu.core_type = #tpu.core_type<tc>, window_params = [{transform_indices = @transform_0, window_bounds = array<i64: 16, 32>}, {transform_indices = @transform_1, window_bounds = array<i64: 64, 32>}, {transform_indices = @transform_2, window_bounds = array<i64: 32, 64>}, {transform_indices = @transform_3, window_bounds = array<i64: 16, 32>}]} {
    %c0 = arith.constant 0 : index
    %c0_0 = arith.constant 0 : index
    %0 = vector.load %arg2[%c0, %c0_0] : memref<16x32xf32, #tpu.memory_space<vmem>>, vector<16x32xf32>
    %c0_i32 = arith.constant 0 : i32
    %1 = arith.cmpi eq, %arg1, %c0_i32 : i32
    %2 = arith.extui %1 : i1 to i32
    %c0_i32_1 = arith.constant 0 : i32
    %3 = arith.cmpi ne, %2, %c0_i32_1 : i32
    scf.if %3 {
      %cst_14 = arith.constant 0.000000e+00 : f32
      %19 = vector.broadcast %cst_14 : f32 to vector<16x32xf32>
      %c0_15 = arith.constant 0 : index
      %c0_16 = arith.constant 0 : index
      %20 = vector.load %arg5[%c0_15, %c0_16] : memref<16x32xf32, #tpu.memory_space<vmem>>, vector<16x32xf32>
      tpu.vector_store %arg5[%c0_15, %c0_16], %19 {strides = array<i32>} : memref<16x32xf32, #tpu.memory_space<vmem>>, vector<16x32xf32>,
    } else {
    }
    %c0_2 = arith.constant 0 : index
    %c0_3 = arith.constant 0 : index
    %4 = vector.load %arg3[%c0_2, %c0_3] : memref<64x32xf32, #tpu.memory_space<vmem>>, vector<64x32xf32>
    %cst = arith.constant dense<0.000000e+00> : vector<16x64xf32>
    %5 = tpu.matmul %0, %4, %cst {dimension_numbers = #tpu.dot_dimension_numbers<[1], [1], [0], [0], [0, 0, 1, 0], [], []>} : vector<16x32xf32>, vector<64x32xf32>, vector<16x64xf32> -> vector<16x64xf32>
    %cst_4 = arith.constant 5.000000e-01 : f32
    %6 = vector.broadcast %cst_4 : f32 to vector<16x64xf32>
    %7 = arith.mulf %6, %5 : vector<16x64xf32>
    %cst_5 = arith.constant 0.707106769 : f32
    %8 = vector.broadcast %cst_5 : f32 to vector<16x64xf32>
    %9 = arith.mulf %5, %8 : vector<16x64xf32>
    %10 = math.erf %9 : vector<16x64xf32>
    %cst_6 = arith.constant 1.000000e+00 : f32
    %11 = vector.broadcast %cst_6 : f32 to vector<16x64xf32>
    %12 = arith.addf %11, %10 : vector<16x64xf32>
    %13 = arith.mulf %7, %12 : vector<16x64xf32>
    %c0_7 = arith.constant 0 : index
    %c0_8 = arith.constant 0 : index
    %14 = vector.load %arg5[%c0_7, %c0_8] : memref<16x32xf32, #tpu.memory_space<vmem>>, vector<16x32xf32>
    %c0_9 = arith.constant 0 : index
    %c0_10 = arith.constant 0 : index
    %15 = vector.load %arg4[%c0_9, %c0_10] : memref<32x64xf32, #tpu.memory_space<vmem>>, vector<32x64xf32>
    %cst_11 = arith.constant dense<0.000000e+00> : vector<16x32xf32>
    %16 = tpu.matmul %13, %15, %cst_11 {dimension_numbers = #tpu.dot_dimension_numbers<[1], [1], [0], [0], [0, 0, 1, 0], [], []>} : vector<16x64xf32>, vector<32x64xf32>, vector<16x32xf32> -> vector<16x32xf32>
    %17 = arith.addf %14, %16 : vector<16x32xf32>
    %c0_12 = arith.constant 0 : index
    %c0_13 = arith.constant 0 : index
    %18 = vector.load %arg5[%c0_12, %c0_13] : memref<16x32xf32, #tpu.memory_space<vmem>>, vector<16x32xf32>
    tpu.vector_store %arg5[%c0_12, %c0_13], %17 {strides = array<i32>} : memref<16x32xf32, #tpu.memory_space<vmem>>, vector<16x32xf32>,
    return
  }
  func.func @transform_0(%arg0: i32, %arg1: i32) -> (i32, i32) {
    %c0_i32 = arith.constant 0 : i32
    %c0_i32_0 = arith.constant 0 : i32
    return %arg0, %c0_i32 : i32, i32
  }
  func.func @transform_1(%arg0: i32, %arg1: i32) -> (i32, i32) {
    %c0_i32 = arith.constant 0 : i32
    %c0_i32_0 = arith.constant 0 : i32
    return %arg1, %c0_i32 : i32, i32
  }
  func.func @transform_2(%arg0: i32, %arg1: i32) -> (i32, i32) {
    %c0_i32 = arith.constant 0 : i32
    %c0_i32_0 = arith.constant 0 : i32
    return %c0_i32, %arg1 : i32, i32
  }
  func.func @transform_3(%arg0: i32, %arg1: i32) -> (i32, i32) {
    %c0_i32 = arith.constant 0 : i32
    %c0_i32_0 = arith.constant 0 : i32
    return %arg0, %c0_i32 : i32, i32
  }
}

</mosaic_0001>

<llo_original>
// kernel: tpu_custom_call.1
$region0: #{tpu_custom_call.1}
  #allocation0 [shape = 'u32[]', space=smem, size = 0x4, offset = 0x4, fixed_abs, tag = 'smem constant byte address 0x4 - core index']
  #allocation1 [shape = 'u32[144,128]{1,0:T(1,128)}', space=vmem, size = 0x12000, scoped, tag = 'internal scratch']
  %s0 = inlined_call_operand.vmem [shape: f32[16,32], index: 0, kind: input, shape index: {}]
  %s1 = inlined_call_operand.vmem [shape: f32[64,32], index: 1, kind: input, shape index: {}]
  %s2 = inlined_call_operand.vmem [shape: f32[32,64], index: 2, kind: input, shape index: {}]
  %s3 = inlined_call_operand.hbm [shape: f32[16,32], index: 3, kind: output, shape index: {}]
  %s4 = sld [smem:[#allocation0]]
  $region26: #{tpu_custom_call.1} parent=0
    _
  %s6 = ssub.s32 1, %s4
  %s7 = scalar_select 0, %s6, %s4
  $region1: #{tpu_custom_call.1} parent=0
    #allocation2 [shape = 'u8[8192]{0}', space=vmem, size = 0x2000, scoped, tag = 'output window, operand 0, single buffered']
    #allocation3 [shape = 's32[1]{0}', space=sflag, size = 0x4, scoped, tag = 'scoped memory for tpu_custom_call.1']
    %8 = vsyncpa [#allocation3], 0
    // Predicated region
    $region2: #{tpu_custom_call.1} parent=1 // pred_check
      _
    $region3: #{tpu_custom_call.1} parent=1 // pred_check_branch
      %10 = sbr.rel (0) target = $region5
    $region4: #{tpu_custom_call.1} parent=1 // pred_region
      _
    $region5: #{tpu_custom_call.1} parent=1 // pred_fallthru
      _
    // Predicated region
    $region6: #{tpu_custom_call.1} parent=1 // pred_check
      _
    $region7: #{tpu_custom_call.1} parent=1 // pred_check_branch
      %12 = sbr.rel (0) target = $region9
    $region8: #{tpu_custom_call.1} parent=1 // pred_region
      _
    $region9: #{tpu_custom_call.1} parent=1 // pred_fallthru
      _
    // Predicated region
    $region10: #{tpu_custom_call.1} parent=1 // pred_check
      _
    $region11: #{tpu_custom_call.1} parent=1 // pred_check_branch
      %14 = sbr.rel (0) target = $region13
    $region12: #{tpu_custom_call.1} parent=1 // pred_region
      _
    $region13: #{tpu_custom_call.1} parent=1 // pred_fallthru
      _
    %v15 = vld [vmem:[%s0] sm:$0xff]
    %v16 = vld [vmem:[%s0 + $0x8] sm:$0xff]
    %p17 = scmp.eq.s32.totalorder 0, 0
    // Predicated region
    $region14: #{tpu_custom_call.1} parent=1 // pred_check
      %p18 = pneg %p17
    $region15: #{tpu_custom_call.1} parent=1 // pred_check_branch
      %20 = sbr.rel (%p18) target = $region17
    $region16: #{tpu_custom_call.1} parent=1 // pred_region
      %vm21 = vcmask 261120
      %22 = vst.msk [vmem:[#allocation2] sm:$0xff] %vm21, 0.0
      %23 = vst.msk [vmem:[#allocation2 + $0x8] sm:$0xff] %vm21, 0.0
    $region17: #{tpu_custom_call.1} parent=1 // pred_fallthru
      _
    %v24 = vld [vmem:[%s1] sm:$0xff]
    %v25 = vld [vmem:[%s1 + $0x8] sm:$0xff]
    %v26 = vld [vmem:[%s1 + $0x10] sm:$0xff]
    %v27 = vld [vmem:[%s1 + $0x18] sm:$0xff]
    %v28 = vld [vmem:[%s1 + $0x20] sm:$0xff]
    %v29 = vld [vmem:[%s1 + $0x28] sm:$0xff]
    %v30 = vld [vmem:[%s1 + $0x30] sm:$0xff]
    %v31 = vld [vmem:[%s1 + $0x38] sm:$0xff]
    %vm32 = vcmask 261120
    %v34 = vsel %vm32, %v15, 0
    %v37 = vsel %vm32, %v16, 0
    %v40 = vsel %vm32, %v24, 0
    %v43 = vsel %vm32, %v25, 0
    %v46 = vsel %vm32, %v26, 0
    %v49 = vsel %vm32, %v27, 0
    %v52 = vsel %vm32, %v28, 0
    %v55 = vsel %vm32, %v29, 0
    %v58 = vsel %vm32, %v30, 0
    %v61 = vsel %vm32, %v31, 0
    %63 = vmatprep.subr.mxu0 0.0
    %64 = vmatpush1.xpose.msra.mxu0 %v40
    %65 = vmatprep.subr.mxu0 0.0
    %66 = vmatpush1.xpose.msra.mxu0 %v43
    %67 = vmatprep.subr.mxu0 0.0
    %68 = vmatpush1.xpose.msra.mxu0 %v46
    %69 = vmatprep.subr.mxu0 0.0
    %70 = vmatpush1.xpose.msra.mxu0 %v49
    %71 = vmatprep.subr.mxu0 0.0
    %72 = vmatpush1.xpose.msra.mxu0 %v52
    %73 = vmatprep.subr.mxu0 0.0
    %74 = vmatpush1.xpose.msra.mxu0 %v55
    %75 = vmatprep.subr.mxu0 0.0
    %76 = vmatpush1.xpose.msra.mxu0 %v58
    %77 = vmatprep.subr.mxu0 0.0
    %78 = vmatpush1.xpose.msra.mxu0 %v61
    %79 = vmatprep.subr.mxu0 0.0
    %80 = vmatpush1.xpose.msra.mxu0 0.0
    %81 = vmatprep.subr.mxu0 0.0
    %82 = vmatpush1.xpose.msra.mxu0 0.0
    %83 = vmatprep.subr.mxu0 0.0
    %84 = vmatpush1.xpose.msra.mxu0 0.0
    %85 = vmatprep.subr.mxu0 0.0
    %86 = vmatpush1.xpose.msra.mxu0 0.0
    %87 = vmatprep.subr.mxu0 0.0
    %88 = vmatpush1.xpose.msra.mxu0 0.0
    %89 = vmatprep.subr.mxu0 0.0
    %90 = vmatpush1.xpose.msra.mxu0 0.0
    %91 = vmatprep.subr.mxu0 0.0
    %92 = vmatpush1.xpose.msra.mxu0 0.0
    %93 = vmatprep.subr.mxu0 0.0
    %94 = vmatpush1.xpose.msra.mxu0 0.0
    %95 = vmatprep.subr.mxu0 0.0
    %96 = vmatpush1.xpose.msra.mxu0 0.0
    %97 = vmatprep.subr.mxu0 0.0
    %98 = vmatpush1.xpose.msra.mxu0 0.0
    %99 = vmatprep.subr.mxu0 0.0
    %100 = vmatpush1.xpose.msra.mxu0 0.0
    %101 = vmatprep.subr.mxu0 0.0
    %102 = vmatpush1.xpose.msra.mxu0 0.0
    %103 = vmatprep.subr.mxu0 0.0
    %104 = vmatpush1.xpose.msra.mxu0 0.0
    %105 = vmatprep.subr.mxu0 0.0
    %106 = vmatpush1.xpose.msra.mxu0 0.0
    %107 = vmatprep.subr.mxu0 0.0
    %108 = vmatpush1.xpose.msra.mxu0 0.0
    %109 = vmatprep.subr.mxu0 0.0
    %110 = vmatpush1.xpose.msra.mxu0 0.0
    %111 = vmatprep.subr.mxu0 0.0
    %112 = vmatpush1.xpose.msra.mxu0 0.0
    %113 = vmatprep.subr.mxu0 0.0
    %114 = vmatpush1.xpose.msra.mxu0 0.0
    %115 = vmatprep.subr.mxu0 0.0
    %116 = vmatpush1.xpose.msra.mxu0 0.0
    %117 = vmatprep.subr.mxu0 0.0
    %118 = vmatpush1.xpose.msra.mxu0 0.0
    %119 = vmatprep.subr.mxu0 0.0
    %120 = vmatpush1.xpose.msra.mxu0 0.0
    %121 = vmatprep.subr.mxu0 0.0
    %122 = vmatpush1.xpose.msra.mxu0 0.0
    %123 = vmatprep.subr.mxu0 0.0
    %124 = vmatpush1.xpose.msra.mxu0 0.0
    %125 = vmatprep.subr.mxu0 0.0
    %126 = vmatpush1.xpose.msra.mxu0 0.0
    %127 = vmatprep.mubr.f32.mxu0 0.0
    %128 = vmatmul.mubr.f32.gmra.mrb[0].mxu0 %v34
    %v129 = vpop.f32.mrb[0].mxu0
    %v130 = vadd.f32 0.0, %v129
    %v131 = vpop.f32.mrb[0].mxu0
    %132 = vmatprep.mubr.f32.mxu0 0.0
    %133 = vmatmul.mubr.f32.gmra.mrb[0].mxu0 %v37
    %v134 = vpop.f32.mrb[0].mxu0
    %v135 = vadd.f32 0.0, %v134
    %v136 = vpop.f32.mrb[0].mxu0
    %137 = vdwg.mxu0
    %v138 = vmul.f32 %v130, 0.5
    %v139 = vmul.f32 %v135, 0.5
    %v140 = vmul.f32 %v130, 0.70710677
    %v141 = vmul.f32 %v135, 0.70710677
    %v142 = verf.f32.pop %v140
    %v143 = verf.f32.pop %v141
    %v144 = vadd.f32 %v142, 1.0
    %v145 = vadd.f32 %v143, 1.0
    %v146 = vmul.f32 %v138, %v144
    %v147 = vmul.f32 %v139, %v145
    %v148 = vld [vmem:[#allocation2] sm:$0xff]
    %v149 = vld [vmem:[#allocation2 + $0x8] sm:$0xff]
    %v150 = vld [vmem:[%s2] sm:$0xff]
    %v151 = vld [vmem:[%s2 + $0x8] sm:$0xff]
    %v152 = vld [vmem:[%s2 + $0x10] sm:$0xff]
    %v153 = vld [vmem:[%s2 + $0x18] sm:$0xff]
    %vm154 = vcmask 523264
    %v156 = vsel %vm154, %v146, 0
    %v159 = vsel %vm154, %v147, 0
    %v162 = vsel %vm154, %v150, 0
    %v165 = vsel %vm154, %v151, 0
    %v168 = vsel %vm154, %v152, 0
    %v171 = vsel %vm154, %v153, 0
    %173 = vmatprep.subr.mxu0 0.0
    %174 = vmatpush1.xpose.msra.mxu0 %v162
    %175 = vmatprep.subr.mxu0 0.0
    %176 = vmatpush1.xpose.msra.mxu0 %v165
    %177 = vmatprep.subr.mxu0 0.0
    %178 = vmatpush1.xpose.msra.mxu0 %v168
    %179 = vmatprep.subr.mxu0 0.0
    %180 = vmatpush1.xpose.msra.mxu0 %v171
    %181 = vmatprep.subr.mxu0 0.0
    %182 = vmatpush1.xpose.msra.mxu0 0.0
    %183 = vmatprep.subr.mxu0 0.0
    %184 = vmatpush1.xpose.msra.mxu0 0.0
    %185 = vmatprep.subr.mxu0 0.0
    %186 = vmatpush1.xpose.msra.mxu0 0.0
    %187 = vmatprep.subr.mxu0 0.0
    %188 = vmatpush1.xpose.msra.mxu0 0.0
    %189 = vmatprep.subr.mxu0 0.0
    %190 = vmatpush1.xpose.msra.mxu0 0.0
    %191 = vmatprep.subr.mxu0 0.0
    %192 = vmatpush1.xpose.msra.mxu0 0.0
    %193 = vmatprep.subr.mxu0 0.0
    %194 = vmatpush1.xpose.msra.mxu0 0.0
    %195 = vmatprep.subr.mxu0 0.0
    %196 = vmatpush1.xpose.msra.mxu0 0.0
    %197 = vmatprep.subr.mxu0 0.0
    %198 = vmatpush1.xpose.msra.mxu0 0.0
    %199 = vmatprep.subr.mxu0 0.0
    %200 = vmatpush1.xpose.msra.mxu0 0.0
    %201 = vmatprep.subr.mxu0 0.0
    %202 = vmatpush1.xpose.msra.mxu0 0.0
    %203 = vmatprep.subr.mxu0 0.0
    %204 = vmatpush1.xpose.msra.mxu0 0.0
    %205 = vmatprep.subr.mxu0 0.0
    %206 = vmatpush1.xpose.msra.mxu0 0.0
    %207 = vmatprep.subr.mxu0 0.0
    %208 = vmatpush1.xpose.msra.mxu0 0.0
    %209 = vmatprep.subr.mxu0 0.0
    %210 = vmatpush1.xpose.msra.mxu0 0.0
    %211 = vmatprep.subr.mxu0 0.0
    %212 = vmatpush1.xpose.msra.mxu0 0.0
    %213 = vmatprep.subr.mxu0 0.0
    %214 = vmatpush1.xpose.msra.mxu0 0.0
    %215 = vmatprep.subr.mxu0 0.0
    %216 = vmatpush1.xpose.msra.mxu0 0.0
    %217 = vmatprep.subr.mxu0 0.0
    %218 = vmatpush1.xpose.msra.mxu0 0.0
    %219 = vmatprep.subr.mxu0 0.0
    %220 = vmatpush1.xpose.msra.mxu0 0.0
    %221 = vmatprep.subr.mxu0 0.0
    %222 = vmatpush1.xpose.msra.mxu0 0.0
    %223 = vmatprep.subr.mxu0 0.0
    %224 = vmatpush1.xpose.msra.mxu0 0.0
    %225 = vmatprep.subr.mxu0 0.0
    %226 = vmatpush1.xpose.msra.mxu0 0.0
    %227 = vmatprep.subr.mxu0 0.0
    %228 = vmatpush1.xpose.msra.mxu0 0.0
    %229 = vmatprep.subr.mxu0 0.0
    %230 = vmatpush1.xpose.msra.mxu0 0.0
    %231 = vmatprep.subr.mxu0 0.0
    %232 = vmatpush1.xpose.msra.mxu0 0.0
    %233 = vmatprep.subr.mxu0 0.0
    %234 = vmatpush1.xpose.msra.mxu0 0.0
    %235 = vmatprep.subr.mxu0 0.0
    %236 = vmatpush1.xpose.msra.mxu0 0.0
    %237 = vmatprep.mubr.f32.mxu0 0.0
    %238 = vmatmul.mubr.f32.gmra.mrb[0].mxu0 %v156
    %v239 = vpop.f32.mrb[0].mxu0
    %v240 = vadd.f32 0.0, %v239
    %v241 = vpop.f32.mrb[0].mxu0
    %242 = vmatprep.mubr.f32.mxu0 0.0
    %243 = vmatmul.mubr.f32.gmra.mrb[0].mxu0 %v159
    %v244 = vpop.f32.mrb[0].mxu0
    %v245 = vadd.f32 0.0, %v244
    %v246 = vpop.f32.mrb[0].mxu0
    %247 = vdwg.mxu0
    %v248 = vadd.f32 %v148, %v240
    %v249 = vadd.f32 %v149, %v245
    %250 = vst.msk [vmem:[#allocation2] sm:$0xff] %vm32, %v248
    %251 = vst.msk [vmem:[#allocation2 + $0x8] sm:$0xff] %vm32, %v249
    // Predicated region
    $region18: #{tpu_custom_call.1} parent=1 // pred_check
      _
    $region19: #{tpu_custom_call.1} parent=1 // pred_check_branch
      %253 = sbr.rel (0) target = $region21
    $region20: #{tpu_custom_call.1} parent=1 // pred_region
      %s255 = ssub.s32 256, 256
      %256 = vsyncadd [#allocation3], %s255
      %s257 = sshll.u32 [#allocation2], 4
      %s258 = int_to_ptr.vmem [resolvable:$true] %s257
      %263 = dma.vmem_to_hbm [thread:$0]  %s258, 256, %s3, [#allocation3], 128, 128, 8
    $region21: #{tpu_custom_call.1} parent=1 // pred_fallthru
      _
    // Predicated region
    $region22: #{tpu_custom_call.1} parent=1 // pred_check
      _
    $region23: #{tpu_custom_call.1} parent=1 // pred_check_branch
      %265 = sbr.rel (0) target = $region25
    $region24: #{tpu_custom_call.1} parent=1 // pred_region
      %266 = dma.done [#allocation3], 256
    $region25: #{tpu_custom_call.1} parent=1 // pred_fallthru
      _
    %267 = vsyncpa [#allocation3], 1

</llo_original>
